<compile_context>
chip_gen: v5e
topology: v5e:2x2
jax: 0.10.0
libtpu: 0.0.40
codegen_flags: <defaults>
</compile_context>

<pallas_src>
import jax
import jax.numpy as jnp
from jax import lax
from jax.experimental import pallas as pl
from jax.experimental.pallas import tpu as pltpu


def _round_up(x, m):
    return (x + m - 1) // m * m


def _predictor_kernel(xc_ref, xr_ref, w1_ref, w2_ref, bias_ref, out_ref):
    """One tile_n-row tile of ROIs -> fused (tile_n, Cp) output.

    w1_ref  : (Cp, D) classifier weight, row-normalized and scaled by `scale`
              in the wrapper; rows [C:] are zero.
    w2_ref  : (Cp, D) bbox weight placed in rows [C:C+4]; other rows zero.
    bias_ref: (1, Cp) scale*b_cls in [0:C], b_bbox in [C:C+4], zero elsewhere.
    out     : columns [0:C] = scores, columns [C:C+4] = raw bbox deltas.
    """
    xc = xc_ref[...].astype(jnp.float32)
    xr = xr_ref[...].astype(jnp.float32)

    # Row-wise L2 norm of xc; eps added to the norm (matches upstream
    # x / (||x|| + 1e-5) exactly). Applied to the matmul result, not to xc.
    norm = jnp.sqrt(jnp.sum(xc * xc, axis=1, keepdims=True))
    inv = pl.reciprocal(norm + jnp.float32(1e-5))        # exact reciprocal

    # Contract D with D (result = A @ B.T) — no transposed weight tile
    # materialized in VMEM.
    dn = (((1,), (1,)), ((), ()))
    cls_part = lax.dot_general(xc, w1_ref[...].astype(jnp.float32), dn,
                               preferred_element_type=jnp.float32)
    box_part = lax.dot_general(xr, w2_ref[...].astype(jnp.float32), dn,
                               preferred_element_type=jnp.float32)

    # cls_part is zero in the bbox columns and box_part is zero in the class
    # columns (disjoint weight rows), so a single fused add is exact.
    out = cls_part * inv + box_part + bias_ref[...].astype(jnp.float32)
    out_ref[...] = out.astype(out_ref.dtype)


def fpn_cosine_predictor(xc, xr, w_cls, b_cls, w_bbox, b_bbox, *,
                         scale, num_bbox_reg_classes, tile_n=512):
    """Pallas wrapper. xc, xr: (N, D); w_cls: (C, D); w_bbox: (4, D)."""
    N, D = xc.shape
    C = w_cls.shape[0]
    R = int(num_bbox_reg_classes)
    scale = jnp.float32(scale)

    # ---- row-invariant prep (runs once, plain XLA) -------------------------
    w_norm = jnp.sqrt(jnp.sum(w_cls.astype(jnp.float32) ** 2, axis=1,
                              keepdims=True))
    w_cls_n = (w_cls.astype(jnp.float32) / (w_norm + 1e-5)) * scale

    # Fused output width: classes then 4 bbox deltas, padded lane-dense.
    Cp = _round_up(C + 4, 128)
    w1 = jnp.zeros((Cp, D), jnp.float32).at[:C].set(w_cls_n)
    w2 = jnp.zeros((Cp, D), jnp.float32).at[C:C + 4].set(
        w_bbox.astype(jnp.float32))
    bias = (jnp.zeros((1, Cp), jnp.float32)
            .at[0, :C].set(b_cls.astype(jnp.float32) * scale)
            .at[0, C:C + 4].set(b_bbox.astype(jnp.float32)))

    # ---- tile the ROI dimension (no input padding; ragged last block) ------
    # Keep the grid >= 2 steps when possible so v7x's two TensorCores both work.
    tile_n = max(8, min(int(tile_n), _round_up(-(-N // 2), 8)))
    grid = (pl.cdiv(N, tile_n),)

    row_spec = pl.BlockSpec((tile_n, D), lambda i: (i, 0))
    resident = lambda shp: pl.BlockSpec(shp, lambda i: (0, 0))  # VMEM-resident

    # Rough VMEM budget (double-buffered streams + resident weights), with
    # headroom; capped at v7x's 64 MiB physical VMEM.
    est_vmem = 4 * (2 * 2 * tile_n * D      # xc, xr streams
                    + 2 * tile_n * Cp       # fused output stream
                    + 2 * (2 * Cp * D + Cp))  # resident weights + bias
    vmem_limit = int(min(64 << 20, max(2 * est_vmem, 32 << 20)))

    cost = pl.CostEstimate(
        flops=4 * N * D * Cp,          # two (N,D)x(D,Cp) matmuls
        transcendentals=2 * N,         # sqrt + reciprocal per row
        bytes_accessed=4 * (2 * N * D + 2 * Cp * D + Cp + N * Cp))

    fused = pl.pallas_call(
        _predictor_kernel,
        out_shape=jax.ShapeDtypeStruct((N, Cp), xc.dtype),
        grid=grid,
        in_specs=[
            row_spec,                 # xc   (streamed per row-tile)
            row_spec,                 # xr   (streamed per row-tile)
            resident((Cp, D)),        # normalized+scaled cls weight (padded)
            resident((Cp, D)),        # bbox weight in rows [C:C+4]
            resident((1, Cp)),        # fused bias
        ],
        out_specs=pl.BlockSpec((tile_n, Cp), lambda i: (i, 0)),
        compiler_params=pltpu.CompilerParams(
            dimension_semantics=("parallel",),
            vmem_limit_bytes=vmem_limit),
        cost_estimate=cost,
    )(xc, xr, w1, w2, bias)

    scores = fused[:, :C]
    bbox4 = fused[:, C:C + 4]
    bbox_deltas = jnp.tile(bbox4, (1, R))   # .repeat(1, num_bbox_reg_classes)
    return scores, bbox_deltas


def _reference(xc, xr, w_cls, b_cls, w_bbox, b_bbox, scale, R):
    eps = 1e-5
    xc_n = xc / (jnp.linalg.norm(xc, axis=1, keepdims=True) + eps)
    w_n = w_cls / (jnp.linalg.norm(w_cls, axis=1, keepdims=True) + eps)
    scores = scale * (xc_n @ w_n.T + b_cls)
    bbox4 = xr @ w_bbox.T + b_bbox
    bbox = jnp.tile(bbox4, (1, R))
    return scores, bbox


if __name__ == "__main__":
    # Small, self-consistent config:
    #   representation_size (in_channels) = 32, num_classes = 8,
    #   CLS_AGNOSTIC_BBOX_REG = False -> num_bbox_reg_classes = num_classes = 8,
    #   COSINE_SCALE = 20.0
    D, C = 32, 8
    R = C
    SCALE = 20.0

    key = jax.random.PRNGKey(0)
    k_xc, k_xr, k_wc, k_wb = jax.random.split(key, 4)

    # Deterministic init matching the module's __init__:
    #   cls_score.weight ~ N(0, 0.01), bbox_pred.weight ~ N(0, 0.001), biases = 0
    w_cls = 0.01 * jax.random.normal(k_wc, (C, D), dtype=jnp.float32)
    b_cls = jnp.zeros((C,), dtype=jnp.float32)
    w_bbox = 0.001 * jax.random.normal(k_wb, (4, D), dtype=jnp.float32)
    b_bbox = jnp.zeros((4,), dtype=jnp.float32)

    ok = True
    # Two ROI counts: one tile-aligned, one ragged (exercises the clipped
    # last block with no wrapper-side padding).
    for N in (16, 35):
        kx, kr = jax.random.split(jax.random.fold_in(k_xc, N))
        xc = jax.random.normal(kx, (N, D), dtype=jnp.float32)
        xr = jax.random.normal(kr, (N, D), dtype=jnp.float32)

        scores, bbox_deltas = fpn_cosine_predictor(
            xc, xr, w_cls, b_cls, w_bbox, b_bbox,
            scale=SCALE, num_bbox_reg_classes=R)
        jax.block_until_ready((scores, bbox_deltas))

        ref_scores, ref_bbox = _reference(xc, xr, w_cls, b_cls, w_bbox, b_bbox,
                                          SCALE, R)
        ok &= scores.shape == (N, C) and bbox_deltas.shape == (N, 4 * R)
        ok &= bool(jnp.allclose(scores, ref_scores, atol=1e-4, rtol=1e-4))
        ok &= bool(jnp.allclose(bbox_deltas, ref_bbox, atol=1e-4, rtol=1e-4))

    assert ok
    print("KERNEL_OK")
</pallas_src>

<mosaic_0001>
module attributes {stable_mosaic.version = 11 : i64} {
  func.func @_predictor_kernel(%arg0: i32, %arg1: memref<8x32xf32, #tpu.memory_space<vmem>>, %arg2: memref<8x32xf32, #tpu.memory_space<vmem>>, %arg3: memref<128x32xf32, #tpu.memory_space<vmem>>, %arg4: memref<128x32xf32, #tpu.memory_space<vmem>>, %arg5: memref<1x128xf32, #tpu.memory_space<vmem>>, %arg6: memref<8x128xf32, #tpu.memory_space<vmem>>) attributes {dimension_semantics = [#tpu.dimension_semantics<parallel>], iteration_bounds = array<i64: 2>, scalar_prefetch = 0 : i64, scratch_operands = 0 : i64, tpu.core_type = #tpu.core_type<tc>, window_params = [{transform_indices = @transform_0, window_bounds = array<i64: 8, 32>}, {transform_indices = @transform_1, window_bounds = array<i64: 8, 32>}, {pipeline_mode = #tpu.pipeline_mode<synchronous>, transform_indices = @transform_2, window_bounds = array<i64: 128, 32>}, {pipeline_mode = #tpu.pipeline_mode<synchronous>, transform_indices = @transform_3, window_bounds = array<i64: 128, 32>}, {pipeline_mode = #tpu.pipeline_mode<synchronous>, transform_indices = @transform_4, window_bounds = array<i64: 1, 128>}, {transform_indices = @transform_5, window_bounds = array<i64: 8, 128>}]} {
    %c0 = arith.constant 0 : index
    %c0_0 = arith.constant 0 : index
    %0 = vector.load %arg1[%c0, %c0_0] : memref<8x32xf32, #tpu.memory_space<vmem>>, vector<8x32xf32>
    %c0_1 = arith.constant 0 : index
    %c0_2 = arith.constant 0 : index
    %1 = vector.load %arg2[%c0_1, %c0_2] : memref<8x32xf32, #tpu.memory_space<vmem>>, vector<8x32xf32>
    %2 = arith.mulf %0, %0 : vector<8x32xf32>
    %cst = arith.constant dense<0.000000e+00> : vector<8xf32>
    %3 = vector.multi_reduction <add>, %2, %cst [1] : vector<8x32xf32> to vector<8xf32>
    %4 = vector.shape_cast %3 : vector<8xf32> to vector<8x1xf32>
    %5 = math.sqrt %4 : vector<8x1xf32>
    %cst_3 = arith.constant 9.99999974E-6 : f32
    %6 = vector.broadcast %cst_3 : f32 to vector<8x1xf32>
    %7 = arith.addf %5, %6 : vector<8x1xf32>
    %8 = tpu.reciprocal %7 : vector<8x1xf32> -> vector<8x1xf32>
    %c0_4 = arith.constant 0 : index
    %c0_5 = arith.constant 0 : index
    %9 = vector.load %arg3[%c0_4, %c0_5] : memref<128x32xf32, #tpu.memory_space<vmem>>, vector<128x32xf32>
    %cst_6 = arith.constant dense<0.000000e+00> : vector<8x128xf32>
    %10 = tpu.matmul %0, %9, %cst_6 {dimension_numbers = #tpu.dot_dimension_numbers<[1], [1], [0], [0], [0, 0, 1, 0], [], []>} : vector<8x32xf32>, vector<128x32xf32>, vector<8x128xf32> -> vector<8x128xf32>
    %c0_7 = arith.constant 0 : index
    %c0_8 = arith.constant 0 : index
    %11 = vector.load %arg4[%c0_7, %c0_8] : memref<128x32xf32, #tpu.memory_space<vmem>>, vector<128x32xf32>
    %cst_9 = arith.constant dense<0.000000e+00> : vector<8x128xf32>
    %12 = tpu.matmul %1, %11, %cst_9 {dimension_numbers = #tpu.dot_dimension_numbers<[1], [1], [0], [0], [0, 0, 1, 0], [], []>} : vector<8x32xf32>, vector<128x32xf32>, vector<8x128xf32> -> vector<8x128xf32>
    %13 = vector.broadcast %8 : vector<8x1xf32> to vector<8x128xf32>
    %14 = arith.mulf %10, %13 : vector<8x128xf32>
    %15 = arith.addf %14, %12 : vector<8x128xf32>
    %c0_10 = arith.constant 0 : index
    %c0_11 = arith.constant 0 : index
    %16 = vector.load %arg5[%c0_10, %c0_11] : memref<1x128xf32, #tpu.memory_space<vmem>>, vector<1x128xf32>
    %17 = vector.broadcast %16 : vector<1x128xf32> to vector<8x128xf32>
    %18 = arith.addf %15, %17 : vector<8x128xf32>
    %c0_12 = arith.constant 0 : index
    %c0_13 = arith.constant 0 : index
    %19 = vector.load %arg6[%c0_12, %c0_13] : memref<8x128xf32, #tpu.memory_space<vmem>>, vector<8x128xf32>
    tpu.vector_store %arg6[%c0_12, %c0_13], %18 {strides = array<i32>} : memref<8x128xf32, #tpu.memory_space<vmem>>, vector<8x128xf32>,
    return
  }
  func.func @transform_0(%arg0: i32) -> (i32, i32) {
    %c0_i32 = arith.constant 0 : i32
    %c0_i32_0 = arith.constant 0 : i32
    return %arg0, %c0_i32 : i32, i32
  }
  func.func @transform_1(%arg0: i32) -> (i32, i32) {
    %c0_i32 = arith.constant 0 : i32
    %c0_i32_0 = arith.constant 0 : i32
    return %arg0, %c0_i32 : i32, i32
  }
  func.func @transform_2(%arg0: i32) -> (i32, i32) {
    %c0_i32 = arith.constant 0 : i32
    %c0_i32_0 = arith.constant 0 : i32
    %c0_i32_1 = arith.constant 0 : i32
    return %c0_i32, %c0_i32_0 : i32, i32
  }
  func.func @transform_3(%arg0: i32) -> (i32, i32) {
    %c0_i32 = arith.constant 0 : i32
    %c0_i32_0 = arith.constant 0 : i32
    %c0_i32_1 = arith.constant 0 : i32
    return %c0_i32, %c0_i32_0 : i32, i32
  }
  func.func @transform_4(%arg0: i32) -> (i32, i32) {
    %c0_i32 = arith.constant 0 : i32
    %c0_i32_0 = arith.constant 0 : i32
    %c0_i32_1 = arith.constant 0 : i32
    return %c0_i32, %c0_i32_0 : i32, i32
  }
  func.func @transform_5(%arg0: i32) -> (i32, i32) {
    %c0_i32 = arith.constant 0 : i32
    %c0_i32_0 = arith.constant 0 : i32
    return %arg0, %c0_i32 : i32, i32
  }
}

</mosaic_0001>

<llo_original>
// kernel: tpu_custom_call.1
$region0: #{tpu_custom_call.1}
  #allocation0 [shape = 'u32[]', space=smem, size = 0x4, offset = 0x4, fixed_abs, tag = 'smem constant byte address 0x4 - core index']
  #allocation1 [shape = 'u32[72,128]{1,0:T(1,128)}', space=vmem, size = 0x9000, scoped, tag = 'internal scratch']
  %s0 = inlined_call_operand.vmem [shape: f32[16,32], index: 0, kind: input, shape index: {}]
  %s1 = inlined_call_operand.vmem [shape: f32[16,32], index: 1, kind: input, shape index: {}]
  %s2 = inlined_call_operand.vmem [shape: f32[128,32], index: 2, kind: input, shape index: {}]
  %s3 = inlined_call_operand.vmem [shape: f32[128,32], index: 3, kind: input, shape index: {}]
  %s4 = inlined_call_operand.vmem [shape: f32[1,128], index: 4, kind: input, shape index: {}]
  %s5 = inlined_call_operand.hbm [shape: f32[16,128], index: 5, kind: output, shape index: {}]
  %s6 = sld [smem:[#allocation0]]
  $region53: #{tpu_custom_call.1} parent=0
    _
  %s8 = ssub.s32 1, %s6
  %s9 = scalar_select 0, %s8, %s6
  $region1: #{tpu_custom_call.1} parent=0
    #allocation2 [shape = 'u8[8192]{0}', space=vmem, size = 0x2000, scoped, tag = 'output window, operand 0']
    #allocation3 [shape = 's32[2]{0}', space=sflag, size = 0x8, scoped, tag = 'scoped memory for tpu_custom_call.1']
    %10 = vsyncpa [#allocation3], 0
    %s11 = scalar_lea.sflag [#allocation3], 1
    %12 = vsyncpa %s11, 0
    loop: start=0, step=1, limit=4
    $region2: #{tpu_custom_call.1} parent=1 // loop_pre_header
      _
    $region3: #{tpu_custom_call.1} parent=1 // loop_header
      %s14 = sphi 0, %s18
      %p15 = scmp.ge.s32.totalorder %s14, 4
      %s24 = sphi 0, %s26
      %s27 = sphi 0, %s24
      %s28 = sphi 0, %s27
      %s44 = sphi 0, %s28
      %s50 = sphi 0, %s52
      %s53 = sphi 0, %s50
      %s54 = sphi 0, %s53
      %s70 = sphi 0, %s54
      %s74 = sphi 0, %s74
      %s76 = sphi 0, %s74
      %s77 = sphi 0, %s76
      %s91 = sphi 0, %s77
      %s95 = sphi 0, %s95
      %s97 = sphi 0, %s95
      %s98 = sphi 0, %s97
      %s112 = sphi 0, %s98
      %s116 = sphi 0, %s116
      %s118 = sphi 0, %s116
      %s119 = sphi 0, %s118
      %s133 = sphi 0, %s119
      %s139 = sphi 0, %s141
      %s142 = sphi 0, %s139
      %s143 = sphi 0, %s142
      %s159 = sphi 0, %s143
    $region4: #{tpu_custom_call.1} parent=1 // loop_header_branch
      %17 = sbr.rel (%p15) target = $region8
    $region5: #{tpu_custom_call.1} parent=1 // loop_body
      %s19 = ssub.s32 %s14, 1
      %s20 = ssub.s32 %s14, 2
      %s21 = sadd.s32 %s14, 1
      %s22 = ssub.s32 %s14, %s21
      %p23 = scmp.eq.s32.totalorder %s22, 0
      %s25 = sadd.s32 %s24, 1
      %s26 = scalar_select %p23, %s24, %s25
      %p29 = pneg %p23
      %p30 = scmp.eq.s32.totalorder %s14, 1
      %p31 = por %p29, %p30
      %p32 = scmp.ne.s32.totalorder %s24, %s27
      %p33 = scmp.eq.s32.totalorder %s14, 0
      %p34 = por %p32, %p33
      %p35 = scmp.ne.s32.totalorder %s24, %s27
      %p36 = scmp.eq.s32.totalorder %s19, 1
      %p37 = por %p35, %p36
      %p38 = scmp.ne.s32.totalorder %s27, %s28
      %p39 = scmp.eq.s32.totalorder %s19, 0
      %p40 = por %p38, %p39
      %p41 = scmp.ne.s32.totalorder %s27, %s28
      %p42 = scmp.eq.s32.totalorder %s20, 1
      %p43 = por %p41, %p42
      %p45 = scmp.ne.s32.totalorder %s28, %s44
      %p46 = scmp.eq.s32.totalorder %s20, 0
      %p47 = por %p45, %p46
      %s48 = ssub.s32 %s14, %s21
      %p49 = scmp.eq.s32.totalorder %s48, 0
      %s51 = sadd.s32 %s50, 1
      %s52 = scalar_select %p49, %s50, %s51
      %p55 = pneg %p49
      %p56 = scmp.eq.s32.totalorder %s14, 1
      %p57 = por %p55, %p56
      %p58 = scmp.ne.s32.totalorder %s50, %s53
      %p59 = scmp.eq.s32.totalorder %s14, 0
      %p60 = por %p58, %p59
      %p61 = scmp.ne.s32.totalorder %s50, %s53
      %p62 = scmp.eq.s32.totalorder %s19, 1
      %p63 = por %p61, %p62
      %p64 = scmp.ne.s32.totalorder %s53, %s54
      %p65 = scmp.eq.s32.totalorder %s19, 0
      %p66 = por %p64, %p65
      %p67 = scmp.ne.s32.totalorder %s53, %s54
      %p68 = scmp.eq.s32.totalorder %s20, 1
      %p69 = por %p67, %p68
      %p71 = scmp.ne.s32.totalorder %s54, %s70
      %p72 = scmp.eq.s32.totalorder %s20, 0
      %p73 = por %p71, %p72
      %s75 = sadd.s32 %s74, 1
      %p78 = scmp.eq.s32.totalorder %s14, 1
      %p79 = scmp.ne.s32.totalorder %s74, %s76
      %p80 = scmp.eq.s32.totalorder %s14, 0
      %p81 = por %p79, %p80
      %p82 = scmp.ne.s32.totalorder %s74, %s76
      %p83 = scmp.eq.s32.totalorder %s19, 1
      %p84 = por %p82, %p83
      %p85 = scmp.ne.s32.totalorder %s76, %s77
      %p86 = scmp.eq.s32.totalorder %s19, 0
      %p87 = por %p85, %p86
      %p88 = scmp.ne.s32.totalorder %s76, %s77
      %p89 = scmp.eq.s32.totalorder %s20, 1
      %p90 = por %p88, %p89
      %p92 = scmp.ne.s32.totalorder %s77, %s91
      %p93 = scmp.eq.s32.totalorder %s20, 0
      %p94 = por %p92, %p93
      %s96 = sadd.s32 %s95, 1
      %p99 = scmp.eq.s32.totalorder %s14, 1
      %p100 = scmp.ne.s32.totalorder %s95, %s97
      %p101 = scmp.eq.s32.totalorder %s14, 0
      %p102 = por %p100, %p101
      %p103 = scmp.ne.s32.totalorder %s95, %s97
      %p104 = scmp.eq.s32.totalorder %s19, 1
      %p105 = por %p103, %p104
      %p106 = scmp.ne.s32.totalorder %s97, %s98
      %p107 = scmp.eq.s32.totalorder %s19, 0
      %p108 = por %p106, %p107
      %p109 = scmp.ne.s32.totalorder %s97, %s98
      %p110 = scmp.eq.s32.totalorder %s20, 1
      %p111 = por %p109, %p110
      %p113 = scmp.ne.s32.totalorder %s98, %s112
      %p114 = scmp.eq.s32.totalorder %s20, 0
      %p115 = por %p113, %p114
      %s117 = sadd.s32 %s116, 1
      %p120 = scmp.eq.s32.totalorder %s14, 1
      %p121 = scmp.ne.s32.totalorder %s116, %s118
      %p122 = scmp.eq.s32.totalorder %s14, 0
      %p123 = por %p121, %p122
      %p124 = scmp.ne.s32.totalorder %s116, %s118
      %p125 = scmp.eq.s32.totalorder %s19, 1
      %p126 = por %p124, %p125
      %p127 = scmp.ne.s32.totalorder %s118, %s119
      %p128 = scmp.eq.s32.totalorder %s19, 0
      %p129 = por %p127, %p128
      %p130 = scmp.ne.s32.totalorder %s118, %s119
      %p131 = scmp.eq.s32.totalorder %s20, 1
      %p132 = por %p130, %p131
      %p134 = scmp.ne.s32.totalorder %s119, %s133
      %p135 = scmp.eq.s32.totalorder %s20, 0
      %p136 = por %p134, %p135
      %s137 = ssub.s32 %s14, %s21
      %p138 = scmp.eq.s32.totalorder %s137, 0
      %s140 = sadd.s32 %s139, 1
      %s141 = scalar_select %p138, %s139, %s140
      %p144 = pneg %p138
      %p145 = scmp.eq.s32.totalorder %s14, 1
      %p146 = por %p144, %p145
      %p147 = scmp.ne.s32.totalorder %s139, %s142
      %p148 = scmp.eq.s32.totalorder %s14, 0
      %p149 = por %p147, %p148
      %p150 = scmp.ne.s32.totalorder %s139, %s142
      %p151 = scmp.eq.s32.totalorder %s19, 1
      %p152 = por %p150, %p151
      %p153 = scmp.ne.s32.totalorder %s142, %s143
      %p154 = scmp.eq.s32.totalorder %s19, 0
      %p155 = por %p153, %p154
      %p156 = scmp.ne.s32.totalorder %s142, %s143
      %p157 = scmp.eq.s32.totalorder %s20, 1
      %p158 = por %p156, %p157
      %p160 = scmp.ne.s32.totalorder %s143, %s159
      %p161 = scmp.eq.s32.totalorder %s20, 0
      %p162 = por %p160, %p161
      %p163 = scmp.le.s32.totalorder 1, %s14
      %p164 = scmp.lt.s32.totalorder %s14, 3
      %p165 = pnand %p163, %p164
      %p166 = pneg %p165
      // Predicated region
      $region9: #{tpu_custom_call.1} parent=5 // pred_check
        _
      $region10: #{tpu_custom_call.1} parent=5 // pred_check_branch
        %168 = sbr.rel (%p165) target = $region12
      $region11: #{tpu_custom_call.1} parent=5 // pred_region
        %s169 = ssub.s32 %s14, 1
        // Predicated region
        $region13: #{tpu_custom_call.1} parent=11 // pred_check
          %p170 = pneg %p87
        $region14: #{tpu_custom_call.1} parent=11 // pred_check_branch
          %172 = sbr.rel (%p170) target = $region16
        $region15: #{tpu_custom_call.1} parent=11 // pred_region
          _
        $region16: #{tpu_custom_call.1} parent=11 // pred_fallthru
          _
        // Predicated region
        $region17: #{tpu_custom_call.1} parent=11 // pred_check
          %p173 = pneg %p108
        $region18: #{tpu_custom_call.1} parent=11 // pred_check_branch
          %175 = sbr.rel (%p173) target = $region20
        $region19: #{tpu_custom_call.1} parent=11 // pred_region
          _
        $region20: #{tpu_custom_call.1} parent=11 // pred_fallthru
          _
        // Predicated region
        $region21: #{tpu_custom_call.1} parent=11 // pred_check
          %p176 = pneg %p129
        $region22: #{tpu_custom_call.1} parent=11 // pred_check_branch
          %178 = sbr.rel (%p176) target = $region24
        $region23: #{tpu_custom_call.1} parent=11 // pred_region
          _
        $region24: #{tpu_custom_call.1} parent=11 // pred_fallthru
          _
      $region12: #{tpu_custom_call.1} parent=5 // pred_fallthru
        _
      %p179 = scmp.lt.s32.totalorder %s14, 2
      // Predicated region
      $region25: #{tpu_custom_call.1} parent=5 // pred_check
        %p180 = pneg %p179
      $region26: #{tpu_custom_call.1} parent=5 // pred_check_branch
        %182 = sbr.rel (%p180) target = $region28
      $region27: #{tpu_custom_call.1} parent=5 // pred_region
        // Predicated region
        $region29: #{tpu_custom_call.1} parent=27 // pred_check
          %p183 = pneg %p34
        $region30: #{tpu_custom_call.1} parent=27 // pred_check_branch
          %185 = sbr.rel (%p183) target = $region32
        $region31: #{tpu_custom_call.1} parent=27 // pred_region
          %p186 = scmp.lt.s32.totalorder %s14, 1
          %s187 = scalar_select %p186, %s14, 1
          %s188 = smul.addr %s187, 8
          %s189 = scalar_lea.vmem %s0, %s188
        $region32: #{tpu_custom_call.1} parent=27 // pred_fallthru
          _
        // Predicated region
        $region33: #{tpu_custom_call.1} parent=27 // pred_check
          %p190 = pneg %p60
        $region34: #{tpu_custom_call.1} parent=27 // pred_check_branch
          %192 = sbr.rel (%p190) target = $region36
        $region35: #{tpu_custom_call.1} parent=27 // pred_region
          %p193 = scmp.lt.s32.totalorder %s14, 1
          %s194 = scalar_select %p193, %s14, 1
          %s195 = smul.addr %s194, 8
          %s196 = scalar_lea.vmem %s1, %s195
        $region36: #{tpu_custom_call.1} parent=27 // pred_fallthru
          _
      $region28: #{tpu_custom_call.1} parent=5 // pred_fallthru
        _
      %p197 = scmp.le.s32.totalorder 1, %s14
      %p198 = scmp.lt.s32.totalorder %s14, 3
      %p199 = pnand %p197, %p198
      %p200 = pneg %p199
      // Predicated region
      $region37: #{tpu_custom_call.1} parent=5 // pred_check
        _
      $region38: #{tpu_custom_call.1} parent=5 // pred_check_branch
        %202 = sbr.rel (%p199) target = $region40
      $region39: #{tpu_custom_call.1} parent=5 // pred_region
        %s203 = ssub.s32 %s14, 1
        %p204 = scmp.lt.s32.totalorder %s19, 1
        %s205 = scalar_select %p204, %s19, 1
        %s206 = smul.addr %s205, 8
        %s207 = scalar_lea.vmem %s0, %s206
        %p208 = pneg %p40
        %p209 = pneg %p37
        %p210 = scmp.lt.s32.totalorder %s19, 1
        %s211 = scalar_select %p210, %s19, 1
        %s212 = smul.addr %s211, 8
        %s213 = scalar_lea.vmem %s1, %s212
        %p214 = pneg %p66
        %p215 = pneg %p63
        %p216 = pneg %p87
        %p217 = pneg %p84
        %p218 = pneg %p108
        %p219 = pneg %p105
        %p220 = pneg %p129
        %p221 = pneg %p126
        %p222 = pneg %p155
        %p223 = pneg %p152
        %s224 = sand.u32 %s142, 1
        %s225 = scalar_lea.sflag [#allocation3], %s224
        %s226 = sand.u32 %s142, 1
        %s227 = smul.addr %s226, 8
        %s228 = scalar_lea.vmem [#allocation2], %s227
        %p229 = scmp.lt.s32.totalorder %s19, 1
        %s230 = scalar_select %p229, %s19, 1
        %s231 = smul.addr %s230, 8
        %s232 = scalar_lea.vmem %s0, %s231
        %p233 = scmp.lt.s32.totalorder %s19, 1
        %s234 = scalar_select %p233, %s19, 1
        %s235 = smul.addr %s234, 8
        %s236 = scalar_lea.vmem %s1, %s235
        %v237 = vld [vmem:[%s232] sm:$0xff]
        %v238 = vld [vmem:[%s236] sm:$0xff]
        %v239 = vmul.f32 %v237, %v237
        %vm240 = vcmask 261120
        %v241 = vsel %vm240, %v239, 0.0
        %242 = vadd.xlane.f32.xlu0 %v241
        %v243 = vpop.xlane.xlu0 %242
        %v244 = vrsqrt.pop %v243
        %v245 = vmul.f32 %v244, %v243
        %v246 = vmul.f32 %v245, %v244
        %v247 = vmul.f32 0.5, %v246
        %v248 = vsub.f32 1.5, %v247
        %v249 = vmul.f32 %v244, %v248
        %v250 = vmul.f32 %v243, %v249
        %vm251 = vcmp.eq.f32.partialorder %v243, inf
        %v252 = vsel %vm251, %v243, %v250
        %vm253 = vcmp.eq.f32.partialorder %v243, 0.0
        %v254 = vand.u32 %v243, 2147483648
        %v255 = vsel %vm253, %v254, %v252
        %v256 = vadd.f32 %v255, 1e-05
        %v257 = vrcp.pop %v256
        %v258 = vmul.f32 %v256, %v257
        %v259 = vsub.f32 1.0, %v258
        %v260 = vmul.f32 %v257, %v259
        %v261 = vadd.f32 %v257, %v260
        %vm262 = vweird.f32 %v256
        %vm263 = vweird.f32 %v257
        %vm264 = vmor %vm262, %vm263
        %v265 = vsel %vm264, %v257, %v261
        %v266 = vand.u32 2147483647, %v256
        %vm267 = vcmp.eq.f32.partialorder %v266, 8.507059e+37
        %v268 = vand.u32 %v256, 2147483648
        %v269 = vor.u32 1.1754944e-38, %v268
        %v270 = vsel %vm267, %v269, %v265
        %v271 = vld [vmem:[%s2] sm:$0xff]
        %v272 = vld [vmem:[%s2 + $0x8] sm:$0xff]
        %v273 = vld [vmem:[%s2 + $0x10] sm:$0xff]
        %v274 = vld [vmem:[%s2 + $0x18] sm:$0xff]
        %v275 = vld [vmem:[%s2 + $0x20] sm:$0xff]
        %v276 = vld [vmem:[%s2 + $0x28] sm:$0xff]
        %v277 = vld [vmem:[%s2 + $0x30] sm:$0xff]
        %v278 = vld [vmem:[%s2 + $0x38] sm:$0xff]
        %v279 = vld [vmem:[%s2 + $0x40] sm:$0xff]
        %v280 = vld [vmem:[%s2 + $0x48] sm:$0xff]
        %v281 = vld [vmem:[%s2 + $0x50] sm:$0xff]
        %v282 = vld [vmem:[%s2 + $0x58] sm:$0xff]
        %v283 = vld [vmem:[%s2 + $0x60] sm:$0xff]
        %v284 = vld [vmem:[%s2 + $0x68] sm:$0xff]
        %v285 = vld [vmem:[%s2 + $0x70] sm:$0xff]
        %v286 = vld [vmem:[%s2 + $0x78] sm:$0xff]
        %v288 = vsel %vm240, %v237, 0
        %v291 = vsel %vm240, %v271, 0
        %v294 = vsel %vm240, %v272, 0
        %v297 = vsel %vm240, %v273, 0
        %v300 = vsel %vm240, %v274, 0
        %v303 = vsel %vm240, %v275, 0
        %v306 = vsel %vm240, %v276, 0
        %v309 = vsel %vm240, %v277, 0
        %v312 = vsel %vm240, %v278, 0
        %v315 = vsel %vm240, %v279, 0
        %v318 = vsel %vm240, %v280, 0
        %v321 = vsel %vm240, %v281, 0
        %v324 = vsel %vm240, %v282, 0
        %v327 = vsel %vm240, %v283, 0
        %v330 = vsel %vm240, %v284, 0
        %v333 = vsel %vm240, %v285, 0
        %v336 = vsel %vm240, %v286, 0
        %338 = vmatpush.xpose.msra.mxu0 %v336
        %339 = vmatpush.xpose.msra.mxu0 %v333
        %340 = vmatpush.xpose.msra.mxu0 %v330
        %341 = vmatpush.xpose.msra.mxu0 %v327
        %342 = vmatpush.xpose.msra.mxu0 %v324
        %343 = vmatpush.xpose.msra.mxu0 %v321
        %344 = vmatpush.xpose.msra.mxu0 %v318
        %345 = vmatpush.xpose.msra.mxu0 %v315
        %346 = vmatpush.xpose.msra.mxu0 %v312
        %347 = vmatpush.xpose.msra.mxu0 %v309
        %348 = vmatpush.xpose.msra.mxu0 %v306
        %349 = vmatpush.xpose.msra.mxu0 %v303
        %350 = vmatpush.xpose.msra.mxu0 %v300
        %351 = vmatpush.xpose.msra.mxu0 %v297
        %352 = vmatpush.xpose.msra.mxu0 %v294
        %353 = vmatpush.xpose.msra.mxu0 %v291
        %354 = vmatmul.f32.gmra.mxu0 %v288
        %v355 = vpop.f32.mrf.mxu0
        %v356 = vadd.f32 0.0, %v355
        %357 = vdwg.mxu0
        %v358 = vld [vmem:[%s3] sm:$0xff]
        %v359 = vld [vmem:[%s3 + $0x8] sm:$0xff]
        %v360 = vld [vmem:[%s3 + $0x10] sm:$0xff]
        %v361 = vld [vmem:[%s3 + $0x18] sm:$0xff]
        %v362 = vld [vmem:[%s3 + $0x20] sm:$0xff]
        %v363 = vld [vmem:[%s3 + $0x28] sm:$0xff]
        %v364 = vld [vmem:[%s3 + $0x30] sm:$0xff]
        %v365 = vld [vmem:[%s3 + $0x38] sm:$0xff]
        %v366 = vld [vmem:[%s3 + $0x40] sm:$0xff]
        %v367 = vld [vmem:[%s3 + $0x48] sm:$0xff]
        %v368 = vld [vmem:[%s3 + $0x50] sm:$0xff]
        %v369 = vld [vmem:[%s3 + $0x58] sm:$0xff]
        %v370 = vld [vmem:[%s3 + $0x60] sm:$0xff]
        %v371 = vld [vmem:[%s3 + $0x68] sm:$0xff]
        %v372 = vld [vmem:[%s3 + $0x70] sm:$0xff]
        %v373 = vld [vmem:[%s3 + $0x78] sm:$0xff]
        %v375 = vsel %vm240, %v238, 0
        %v378 = vsel %vm240, %v358, 0
        %v381 = vsel %vm240, %v359, 0
        %v384 = vsel %vm240, %v360, 0
        %v387 = vsel %vm240, %v361, 0
        %v390 = vsel %vm240, %v362, 0
        %v393 = vsel %vm240, %v363, 0
        %v396 = vsel %vm240, %v364, 0
        %v399 = vsel %vm240, %v365, 0
        %v402 = vsel %vm240, %v366, 0
        %v405 = vsel %vm240, %v367, 0
        %v408 = vsel %vm240, %v368, 0
        %v411 = vsel %vm240, %v369, 0
        %v414 = vsel %vm240, %v370, 0
        %v417 = vsel %vm240, %v371, 0
        %v420 = vsel %vm240, %v372, 0
        %v423 = vsel %vm240, %v373, 0
        %425 = vmatpush.xpose.msra.mxu0 %v423
        %426 = vmatpush.xpose.msra.mxu0 %v420
        %427 = vmatpush.xpose.msra.mxu0 %v417
        %428 = vmatpush.xpose.msra.mxu0 %v414
        %429 = vmatpush.xpose.msra.mxu0 %v411
        %430 = vmatpush.xpose.msra.mxu0 %v408
        %431 = vmatpush.xpose.msra.mxu0 %v405
        %432 = vmatpush.xpose.msra.mxu0 %v402
        %433 = vmatpush.xpose.msra.mxu0 %v399
        %434 = vmatpush.xpose.msra.mxu0 %v396
        %435 = vmatpush.xpose.msra.mxu0 %v393
        %436 = vmatpush.xpose.msra.mxu0 %v390
        %437 = vmatpush.xpose.msra.mxu0 %v387
        %438 = vmatpush.xpose.msra.mxu0 %v384
        %439 = vmatpush.xpose.msra.mxu0 %v381
        %440 = vmatpush.xpose.msra.mxu0 %v378
        %441 = vmatmul.f32.gmra.mxu0 %v375
        %v442 = vpop.f32.mrf.mxu0
        %v443 = vadd.f32 0.0, %v442
        %444 = vdwg.mxu0
        %v445 = vmul.f32 %v356, %v270
        %v446 = vadd.f32 %v445, %v443
        %v447 = vld [vmem:[%s4] sm:$0x1]
        %v449 = vperm.slane %v447, 0
        %v451 = vadd.f32 %v446, %v449
        %452 = vst [vmem:[%s228] sm:$0xff] %v451
        %s453 = sand.u32 %s142, 1
        %s454 = scalar_lea.sflag [#allocation3], %s453
        %s455 = sand.u32 %s142, 1
        %s456 = smul.addr %s455, 8
        %s457 = scalar_lea.vmem [#allocation2], %s456
        // Predicated region
        $region41: #{tpu_custom_call.1} parent=39 // pred_check
          %p458 = pneg %p152
        $region42: #{tpu_custom_call.1} parent=39 // pred_check_branch
          %460 = sbr.rel (%p458) target = $region44
        $region43: #{tpu_custom_call.1} parent=39 // pred_region
          %462 = vsyncadd %s454, 0
          %s463 = smul.addr %s19, 8
          %s464 = scalar_lea.hbm %s5, %s463
          %s466 = sshll.u32 %s457, 4
          %s467 = int_to_ptr.vmem [resolvable:$true] %s466
          %s468 = sshll.u32 %s464, 4
          %s469 = int_to_ptr.hbm [resolvable:$true] %s468
          %471 = dma.vmem_to_hbm [thread:$0]  %s467, 128, %s469, %s454
        $region44: #{tpu_custom_call.1} parent=39 // pred_fallthru
          _
      $region40: #{tpu_custom_call.1} parent=5 // pred_fallthru
        _
      %p472 = scmp.le.s32.totalorder 2, %s14
      // Predicated region
      $region45: #{tpu_custom_call.1} parent=5 // pred_check
        %p473 = pneg %p472
      $region46: #{tpu_custom_call.1} parent=5 // pred_check_branch
        %475 = sbr.rel (%p473) target = $region48
      $region47: #{tpu_custom_call.1} parent=5 // pred_region
        %s476 = ssub.s32 %s14, 2
        // Predicated region
        $region49: #{tpu_custom_call.1} parent=47 // pred_check
          %p477 = pneg %p158
        $region50: #{tpu_custom_call.1} parent=47 // pred_check_branch
          %479 = sbr.rel (%p477) target = $region52
        $region51: #{tpu_custom_call.1} parent=47 // pred_region
          %s480 = sand.u32 %s143, 1
          %s481 = scalar_lea.sflag [#allocation3], %s480
          %s482 = sand.u32 %s143, 1
          %s483 = smul.addr %s482, 8
          %s484 = scalar_lea.vmem [#allocation2], %s483
          %486 = dma.done %s481, 128
        $region52: #{tpu_custom_call.1} parent=47 // pred_fallthru
          _
      $region48: #{tpu_custom_call.1} parent=5 // pred_fallthru
        _
    $region6: #{tpu_custom_call.1} parent=1 // loop_footer
      %s18 = sadd.s32 1, %s14
    $region7: #{tpu_custom_call.1} parent=1 // loop_footer_branch
      %13 = sbr.rel target = $region3
    $region8: #{tpu_custom_call.1} parent=1 // loop_exit
      _
    %487 = vsyncpa [#allocation3], 1
    %s488 = scalar_lea.sflag [#allocation3], 1
    %489 = vsyncpa %s488, 1

</llo_original>
